<compile_context>
chip_gen: v5e
topology: v5e:2x2
jax: 0.10.0
libtpu: 0.0.40
codegen_flags: <defaults>
</compile_context>

<pallas_src>
import jax
import jax.numpy as jnp
from jax.experimental import pallas as pl
from jax.experimental.pallas import tpu as pltpu

_LANE = 128
_SUBLANE = 8


def _mlp_kernel(x_ref, w1_ref, b1_ref, w2_ref, b2_ref, o_ref):
    # fc1: (TB, D) @ (D, Hp) -> f32 accumulate on the MXU; bias + ReLU in f32 (VPU).
    x = x_ref[...].astype(jnp.bfloat16)
    h = jnp.dot(x, w1_ref[...], preferred_element_type=jnp.float32)
    h = jnp.maximum(h + b1_ref[...], 0.0)
    # fc2: (TB, Hp) @ (Hp, C) -> f32. C stays narrow (unpadded) so only C columns
    # are written back to HBM (masked vst, but ~12.8x fewer output bytes).
    o = jnp.dot(h.astype(jnp.bfloat16), w2_ref[...],
                preferred_element_type=jnp.float32)
    o_ref[...] = (o + b2_ref[...]).astype(o_ref.dtype)


def _pad_axis(a, axis, multiple):
    size = a.shape[axis]
    pad = (-size) % multiple
    if pad == 0:
        return a
    widths = [(0, 0)] * a.ndim
    widths[axis] = (0, pad)
    return jnp.pad(a, widths)


def prepare_params(w1, b1, w2, b2):
    """One-time weight prep (call at model-init, NOT per forward).

    w1: (D, H), b1: (H,), w2: (H, C), b2: (C,)  ->
      w1p: (D, Hp) bf16, b1p: (1, Hp) f32, w2p: (Hp, C) bf16, b2p: (1, C) f32
    Hp = round_up(H, 128). The output dim C is left unpadded so the kernel's
    HBM writeback is only C columns wide.
    """
    H = w1.shape[1]
    C = w2.shape[1]
    w1p = _pad_axis(w1, 1, _LANE).astype(jnp.bfloat16)             # (D, Hp)
    b1p = _pad_axis(b1.reshape(1, H), 1, _LANE).astype(jnp.float32)  # (1, Hp)
    w2p = _pad_axis(w2, 0, _LANE).astype(jnp.bfloat16)             # (Hp, C)
    b2p = b2.reshape(1, C).astype(jnp.float32)                     # (1, C)
    return w1p, b1p, w2p, b2p


def simple_nn_forward(x, params, *, block_b=None):
    """x: (B, D) f32 or bf16 (bf16 passes through; f32 is cast in-kernel)."""
    w1p, b1p, w2p, b2p = params
    B, D = x.shape
    Hp = w1p.shape[1]
    C = w2p.shape[1]

    if block_b is None:
        if B <= 256:
            block_b = B
        else:
            # >=2 grid steps so v7x megacore shards the batch across both TCs;
            # cap at 2048 to amortize ~0.35us/step overhead (VMEM use is tiny).
            # On v5e, 512-1024 via the block_b arg is a reasonable override.
            half = (B + 1) // 2
            block_b = min(2048, ((half + _SUBLANE - 1) // _SUBLANE) * _SUBLANE)

    if block_b >= B:
        # Small batch: single gridless invocation, everything resident in VMEM.
        return pl.pallas_call(
            _mlp_kernel,
            out_shape=jax.ShapeDtypeStruct((B, C), jnp.float32),
            in_specs=[pl.BlockSpec(memory_space=pltpu.MemorySpace.VMEM)] * 5,
            out_specs=pl.BlockSpec(memory_space=pltpu.MemorySpace.VMEM),
        )(x, w1p, b1p, w2p, b2p)

    # Batch-tiled path: no jnp.pad copy of x. pl.cdiv grid with a ragged last
    # block; the partial input block may contain undefined rows, which is safe
    # ONLY because the kernel has no reduction over the batch axis and the
    # corresponding output rows are dropped on writeback (keep this invariant).
    block_b = max(_SUBLANE, (block_b // _SUBLANE) * _SUBLANE)
    return pl.pallas_call(
        _mlp_kernel,
        out_shape=jax.ShapeDtypeStruct((B, C), jnp.float32),
        grid=(pl.cdiv(B, block_b),),
        in_specs=[
            pl.BlockSpec((block_b, D), lambda i: (i, 0)),
            pl.BlockSpec((D, Hp), lambda i: (0, 0)),   # weights/biases stay
            pl.BlockSpec((1, Hp), lambda i: (0, 0)),   # VMEM-resident via
            pl.BlockSpec((Hp, C), lambda i: (0, 0)),   # constant index maps
            pl.BlockSpec((1, C), lambda i: (0, 0)),
        ],
        out_specs=pl.BlockSpec((block_b, C), lambda i: (i, 0)),
        compiler_params=pltpu.CompilerParams(
            dimension_semantics=("parallel",),
        ),
    )(x, w1p, b1p, w2p, b2p)


def _ref_forward_bf16(x, w1, b1, w2, b2):
    # Reference using the same bf16-operand / f32-accumulate math as the kernel.
    h = jnp.dot(x.astype(jnp.bfloat16), w1.astype(jnp.bfloat16),
                preferred_element_type=jnp.float32) + b1
    h = jnp.maximum(h, 0.0)
    return jnp.dot(h.astype(jnp.bfloat16), w2.astype(jnp.bfloat16),
                   preferred_element_type=jnp.float32) + b2


if __name__ == "__main__":
    # SimpleNN(input_size=32, num_classes=10); hidden=50 is fixed by the module.
    batch = 8
    input_size = 32
    hidden = 50
    num_classes = 10

    key = jax.random.PRNGKey(0)
    kx, kw1, kb1, kw2, kb2 = jax.random.split(key, 5)

    x = jax.random.normal(kx, (batch, input_size), dtype=jnp.float32)
    w1 = jax.random.normal(kw1, (input_size, hidden), dtype=jnp.float32) * 0.1
    b1 = jax.random.normal(kb1, (hidden,), dtype=jnp.float32) * 0.1
    w2 = jax.random.normal(kw2, (hidden, num_classes), dtype=jnp.float32) * 0.1
    b2 = jax.random.normal(kb2, (num_classes,), dtype=jnp.float32) * 0.1

    # One-time weight prep (model-init time).
    params = jax.block_until_ready(prepare_params(w1, b1, w2, b2))

    # 1) Small-batch (gridless) path.
    out = jax.block_until_ready(simple_nn_forward(x, params))
    assert out.shape == (batch, num_classes)
    ref_bf16 = _ref_forward_bf16(x, w1, b1, w2, b2)
    ref_f32 = jnp.maximum(x @ w1 + b1, 0.0) @ w2 + b2
    assert jnp.allclose(out, ref_bf16, atol=1e-3, rtol=1e-3), "mismatch vs bf16 ref"
    assert jnp.allclose(out, ref_f32, atol=5e-2, rtol=5e-2), "mismatch vs f32 ref"

    # 2) Batch-tiled path with a ragged last block (200 = 3*64 + 8).
    big_b = 200
    xb = jax.random.normal(kx, (big_b, input_size), dtype=jnp.float32)
    out_b = jax.block_until_ready(
        simple_nn_forward(xb, params, block_b=64))
    assert out_b.shape == (big_b, num_classes)
    ref_b = _ref_forward_bf16(xb, w1, b1, w2, b2)
    assert jnp.allclose(out_b, ref_b, atol=1e-3, rtol=1e-3), "tiled path mismatch"

    # 3) Default heuristic for mid-size batch (B>256 -> 2 grid steps, megacore).
    mid_b = 300
    xm = jax.random.normal(kx, (mid_b, input_size), dtype=jnp.float32)
    out_m = jax.block_until_ready(simple_nn_forward(xm, params))
    assert out_m.shape == (mid_b, num_classes)
    ref_m = _ref_forward_bf16(xm, w1, b1, w2, b2)
    assert jnp.allclose(out_m, ref_m, atol=1e-3, rtol=1e-3), "mid-batch mismatch"

    print("KERNEL_OK")
</pallas_src>

<mosaic_0001>
module attributes {stable_mosaic.version = 11 : i64} {
  func.func @_mlp_kernel(%arg0: memref<8x32xf32, #tpu.memory_space<vmem>>, %arg1: memref<32x128xbf16, #tpu.memory_space<vmem>>, %arg2: memref<1x128xf32, #tpu.memory_space<vmem>>, %arg3: memref<128x10xbf16, #tpu.memory_space<vmem>>, %arg4: memref<1x10xf32, #tpu.memory_space<vmem>>, %arg5: memref<8x10xf32, #tpu.memory_space<vmem>>) attributes {dimension_semantics = [], scalar_prefetch = 0 : i64, scratch_operands = 0 : i64, tpu.core_type = #tpu.core_type<tc>} {
    %c0 = arith.constant 0 : index
    %c0_0 = arith.constant 0 : index
    %0 = vector.load %arg0[%c0, %c0_0] : memref<8x32xf32, #tpu.memory_space<vmem>>, vector<8x32xf32>
    %1 = arith.truncf %0 : vector<8x32xf32> to vector<8x32xbf16>
    %c0_1 = arith.constant 0 : index
    %c0_2 = arith.constant 0 : index
    %2 = vector.load %arg1[%c0_1, %c0_2] : memref<32x128xbf16, #tpu.memory_space<vmem>>, vector<32x128xbf16>
    %cst = arith.constant dense<0.000000e+00> : vector<8x128xf32>
    %3 = tpu.matmul %1, %2, %cst {dimension_numbers = #tpu.dot_dimension_numbers<[1], [0], [0], [1], [0, 0, 1, 1], [], []>} : vector<8x32xbf16>, vector<32x128xbf16>, vector<8x128xf32> -> vector<8x128xf32>
    %c0_3 = arith.constant 0 : index
    %c0_4 = arith.constant 0 : index
    %4 = vector.load %arg2[%c0_3, %c0_4] : memref<1x128xf32, #tpu.memory_space<vmem>>, vector<1x128xf32>
    %5 = vector.broadcast %4 : vector<1x128xf32> to vector<8x128xf32>
    %6 = arith.addf %3, %5 : vector<8x128xf32>
    %cst_5 = arith.constant 0.000000e+00 : f32
    %7 = vector.broadcast %cst_5 : f32 to vector<8x128xf32>
    %8 = arith.maximumf %6, %7 : vector<8x128xf32>
    %9 = arith.truncf %8 : vector<8x128xf32> to vector<8x128xbf16>
    %c0_6 = arith.constant 0 : index
    %c0_7 = arith.constant 0 : index
    %10 = vector.load %arg3[%c0_6, %c0_7] : memref<128x10xbf16, #tpu.memory_space<vmem>>, vector<128x10xbf16>
    %cst_8 = arith.constant dense<0.000000e+00> : vector<8x10xf32>
    %11 = tpu.matmul %9, %10, %cst_8 {dimension_numbers = #tpu.dot_dimension_numbers<[1], [0], [0], [1], [0, 0, 1, 1], [], []>} : vector<8x128xbf16>, vector<128x10xbf16>, vector<8x10xf32> -> vector<8x10xf32>
    %c0_9 = arith.constant 0 : index
    %c0_10 = arith.constant 0 : index
    %12 = vector.load %arg4[%c0_9, %c0_10] : memref<1x10xf32, #tpu.memory_space<vmem>>, vector<1x10xf32>
    %13 = vector.broadcast %12 : vector<1x10xf32> to vector<8x10xf32>
    %14 = arith.addf %11, %13 : vector<8x10xf32>
    %c0_11 = arith.constant 0 : index
    %c0_12 = arith.constant 0 : index
    %15 = vector.load %arg5[%c0_11, %c0_12] : memref<8x10xf32, #tpu.memory_space<vmem>>, vector<8x10xf32>
    tpu.vector_store %arg5[%c0_11, %c0_12], %14 {strides = array<i32>} : memref<8x10xf32, #tpu.memory_space<vmem>>, vector<8x10xf32>,
    return
  }
}

</mosaic_0001>

<llo_original>
// kernel: tpu_custom_call.1
$region0: #{tpu_custom_call.1}
  #allocation0 [shape = 'u32[]', space=smem, size = 0x4, offset = 0x4, fixed_abs, tag = 'smem constant byte address 0x4 - core index']
  #allocation1 [shape = 'u32[72,128]{1,0:T(1,128)}', space=vmem, size = 0x9000, scoped, tag = 'internal scratch']
  %s0 = inlined_call_operand.vmem [shape: f32[8,32], index: 0, kind: input, shape index: {}]
  %s1 = inlined_call_operand.vmem [shape: bf16[32,128], index: 1, kind: input, shape index: {}]
  %s2 = inlined_call_operand.vmem [shape: f32[1,128], index: 2, kind: input, shape index: {}]
  %s3 = inlined_call_operand.vmem [shape: bf16[128,10], index: 3, kind: input, shape index: {}]
  %s4 = inlined_call_operand.vmem [shape: f32[1,10], index: 4, kind: input, shape index: {}]
  %s5 = inlined_call_operand.hbm [shape: f32[8,10], index: 5, kind: output, shape index: {}]
  %s6 = sld [smem:[#allocation0]]
  $region30: #{tpu_custom_call.1} parent=0
    _
  %s8 = ssub.s32 1, %s6
  %s9 = scalar_select 0, %s8, %s6
  $region1: #{tpu_custom_call.1} parent=0
    #allocation2 [shape = 'u8[4096]{0}', space=vmem, size = 0x1000, scoped, tag = 'output window, operand 0, single buffered']
    #allocation3 [shape = 's32[1]{0}', space=sflag, size = 0x4, scoped, tag = 'scoped memory for tpu_custom_call.1']
    %10 = vsyncpa [#allocation3], 0
    // Predicated region
    $region2: #{tpu_custom_call.1} parent=1 // pred_check
      _
    $region3: #{tpu_custom_call.1} parent=1 // pred_check_branch
      %12 = sbr.rel (0) target = $region5
    $region4: #{tpu_custom_call.1} parent=1 // pred_region
      _
    $region5: #{tpu_custom_call.1} parent=1 // pred_fallthru
      _
    // Predicated region
    $region6: #{tpu_custom_call.1} parent=1 // pred_check
      _
    $region7: #{tpu_custom_call.1} parent=1 // pred_check_branch
      %14 = sbr.rel (0) target = $region9
    $region8: #{tpu_custom_call.1} parent=1 // pred_region
      _
    $region9: #{tpu_custom_call.1} parent=1 // pred_fallthru
      _
    // Predicated region
    $region10: #{tpu_custom_call.1} parent=1 // pred_check
      _
    $region11: #{tpu_custom_call.1} parent=1 // pred_check_branch
      %16 = sbr.rel (0) target = $region13
    $region12: #{tpu_custom_call.1} parent=1 // pred_region
      _
    $region13: #{tpu_custom_call.1} parent=1 // pred_fallthru
      _
    // Predicated region
    $region14: #{tpu_custom_call.1} parent=1 // pred_check
      _
    $region15: #{tpu_custom_call.1} parent=1 // pred_check_branch
      %18 = sbr.rel (0) target = $region17
    $region16: #{tpu_custom_call.1} parent=1 // pred_region
      _
    $region17: #{tpu_custom_call.1} parent=1 // pred_fallthru
      _
    // Predicated region
    $region18: #{tpu_custom_call.1} parent=1 // pred_check
      _
    $region19: #{tpu_custom_call.1} parent=1 // pred_check_branch
      %20 = sbr.rel (0) target = $region21
    $region20: #{tpu_custom_call.1} parent=1 // pred_region
      _
    $region21: #{tpu_custom_call.1} parent=1 // pred_fallthru
      _
    %v22 = vld [vmem:[%s0] sm:$0xff]
    %v23 = vpack.c.bf16 %v22, %v22
    %v24 = vld [vmem:[%s1] sm:$0xf]
    %v25 = vld [vmem:[%s1 + $0x4] sm:$0xf]
    %v26 = vld [vmem:[%s1 + $0x8] sm:$0xf]
    %v27 = vld [vmem:[%s1 + $0xc] sm:$0xf]
    %v28 = vld [vmem:[%s2] sm:$0x1]
    %v30 = vperm.slane %v28, 0
    %v36 = vunpack.c.l.b16 %v24
    %v37 = vunpack.c.l.b16 %v25
    %v38 = vunpack.c.l.b16 %v26
    %v39 = vunpack.c.l.b16 %v27
    %v40 = vpack.c.b16 %v37, %v36
    %v41 = vpack.c.b16 %v39, %v38
    %vm44 = vcmask 261120
    %v46 = vsel %vm44, %v23, 0
    %48 = vmatpush.bf16.msra.mxu0 0
    %49 = vmatpush.bf16.msra.mxu0 0
    %50 = vmatpush.bf16.msra.mxu0 0
    %51 = vmatpush.bf16.msra.mxu0 0
    %52 = vmatpush.bf16.msra.mxu0 0
    %53 = vmatpush.bf16.msra.mxu0 0
    %54 = vmatpush.bf16.msra.mxu0 %v41
    %55 = vmatpush.bf16.msra.mxu0 %v40
    %56 = vmatmul.bf16.gmra.mxu0 %v46
    %v57 = vpop.f32.mrf.mxu0
    %v58 = vadd.f32 %v30, %v57
    %v59 = vpop.f32.mrf.mxu0
    %60 = vdwg.mxu0
    %v61 = vmax.f32 %v58, 0.0
    %v62 = vpack.c.bf16 %v61, %v61
    %v63 = vld [vmem:[%s3] sm:$0xf]
    %v64 = vld [vmem:[%s3 + $0x4] sm:$0xf]
    %v65 = vld [vmem:[%s3 + $0x8] sm:$0xf]
    %v66 = vld [vmem:[%s3 + $0xc] sm:$0xf]
    %v67 = vld [vmem:[%s3 + $0x10] sm:$0xf]
    %v68 = vld [vmem:[%s3 + $0x14] sm:$0xf]
    %v69 = vld [vmem:[%s3 + $0x18] sm:$0xf]
    %v70 = vld [vmem:[%s3 + $0x1c] sm:$0xf]
    %v71 = vld [vmem:[%s3 + $0x20] sm:$0xf]
    %v72 = vld [vmem:[%s3 + $0x24] sm:$0xf]
    %v73 = vld [vmem:[%s3 + $0x28] sm:$0xf]
    %v74 = vld [vmem:[%s3 + $0x2c] sm:$0xf]
    %v75 = vld [vmem:[%s3 + $0x30] sm:$0xf]
    %v76 = vld [vmem:[%s3 + $0x34] sm:$0xf]
    %v77 = vld [vmem:[%s3 + $0x38] sm:$0xf]
    %v78 = vld [vmem:[%s3 + $0x3c] sm:$0xf]
    %v79 = vld [vmem:[%s4] sm:$0x1]
    %v81 = vperm.slane %v79, 0
    %v99 = vunpack.c.l.b16 %v63
    %v100 = vunpack.c.l.b16 %v64
    %v101 = vunpack.c.l.b16 %v65
    %v102 = vunpack.c.l.b16 %v66
    %v103 = vunpack.c.l.b16 %v67
    %v104 = vunpack.c.l.b16 %v68
    %v105 = vunpack.c.l.b16 %v69
    %v106 = vunpack.c.l.b16 %v70
    %v107 = vunpack.c.l.b16 %v71
    %v108 = vunpack.c.l.b16 %v72
    %v109 = vunpack.c.l.b16 %v73
    %v110 = vunpack.c.l.b16 %v74
    %v111 = vunpack.c.l.b16 %v75
    %v112 = vunpack.c.l.b16 %v76
    %v113 = vunpack.c.l.b16 %v77
    %v114 = vunpack.c.l.b16 %v78
    %v115 = vpack.c.b16 %v100, %v99
    %v116 = vpack.c.b16 %v102, %v101
    %v117 = vpack.c.b16 %v104, %v103
    %v118 = vpack.c.b16 %v106, %v105
    %v119 = vpack.c.b16 %v108, %v107
    %v120 = vpack.c.b16 %v110, %v109
    %v121 = vpack.c.b16 %v112, %v111
    %v122 = vpack.c.b16 %v114, %v113
    %131 = vmatpush.bf16.msra.mxu0 %v122
    %132 = vmatpush.bf16.msra.mxu0 %v121
    %133 = vmatpush.bf16.msra.mxu0 %v120
    %134 = vmatpush.bf16.msra.mxu0 %v119
    %135 = vmatpush.bf16.msra.mxu0 %v118
    %136 = vmatpush.bf16.msra.mxu0 %v117
    %137 = vmatpush.bf16.msra.mxu0 %v116
    %138 = vmatpush.bf16.msra.mxu0 %v115
    %139 = vmatmul.bf16.gmra.mxu0 %v62
    %v140 = vpop.f32.mrf.mxu0
    %v141 = vadd.f32 %v81, %v140
    %v142 = vpop.f32.mrf.mxu0
    %143 = vdwg.mxu0
    %vm144 = vcmask 80896
    %145 = vst.msk [vmem:[#allocation2] sm:$0xff] %vm144, %v141
    // Predicated region
    $region22: #{tpu_custom_call.1} parent=1 // pred_check
      _
    $region23: #{tpu_custom_call.1} parent=1 // pred_check_branch
      %147 = sbr.rel (0) target = $region25
    $region24: #{tpu_custom_call.1} parent=1 // pred_region
      %149 = vsyncadd [#allocation3], 0
      %s151 = sshll.u32 [#allocation2], 4
      %s152 = int_to_ptr.vmem [resolvable:$true] %s151
      %s153 = sshll.u32 %s5, 4
      %s154 = int_to_ptr.hbm [resolvable:$true] %s153
      %156 = dma.vmem_to_hbm [thread:$0]  %s152, 128, %s154, [#allocation3]
    $region25: #{tpu_custom_call.1} parent=1 // pred_fallthru
      _
    // Predicated region
    $region26: #{tpu_custom_call.1} parent=1 // pred_check
      _
    $region27: #{tpu_custom_call.1} parent=1 // pred_check_branch
      %158 = sbr.rel (0) target = $region29
    $region28: #{tpu_custom_call.1} parent=1 // pred_region
      %160 = dma.done [#allocation3], 128
    $region29: #{tpu_custom_call.1} parent=1 // pred_fallthru
      _
    %161 = vsyncpa [#allocation3], 1

</llo_original>
